<compile_context>
chip_gen: v5e
topology: v5e:2x2
jax: 0.10.0
libtpu: 0.0.40
codegen_flags: <defaults>
</compile_context>

<pallas_src>
import jax
import jax.numpy as jnp
from jax.experimental import pallas as pl
from jax.experimental.pallas import tpu as pltpu


# ---------------------------------------------------------------------------
# Kernels
# ---------------------------------------------------------------------------

def _avg_pool_flat_kernel(p_ref, x_ref, o_ref):
    """Small-plane path: whole 2x2 pool as one lane-dense MXU matmul.

    x_ref: (gb, H*W)       one (n, c) plane per row, lane-packed
    p_ref: (H*W, Ho*Wo)    0.25 pooling matrix (constant block index, resident)
    o_ref: (gb, Ho*Wo)
    """
    x = x_ref[...].astype(p_ref.dtype)
    o_ref[...] = jnp.dot(
        x, p_ref[...], preferred_element_type=jnp.float32
    ).astype(o_ref.dtype)


def _avg_pool_plane_kernel(b_ref, x_ref, o_ref):
    """Large-plane path: strided-sublane H add (VPU) + (W, Wo) matmul (MXU).

    x_ref: (gb, ht, W), b_ref: (W, Wo) with 0.25 entries, o_ref: (gb, ht//2, Wo)
    """
    gb, ht, _ = x_ref.shape
    hob = ht // 2
    # 2x2 pool, step 1 (H): even/odd row strided loads + one VPU add.
    row_sum = x_ref[:, pl.ds(0, hob, 2), :] + x_ref[:, pl.ds(1, hob, 2), :]
    # 2x2 pool, step 2 (W): one lane-filling MXU matmul; 0.25 entries make the
    # unscaled row sum the 2x2 mean.  f32 accumulation.
    flat = row_sum.reshape(gb * hob, -1).astype(b_ref.dtype)
    pooled = jnp.dot(flat, b_ref[...], preferred_element_type=jnp.float32)
    o_ref[...] = pooled.reshape(gb, hob, -1).astype(o_ref.dtype)


# ---------------------------------------------------------------------------
# Tiling heuristics (padded-VMEM aware)
# ---------------------------------------------------------------------------

_MIN_STEPS = 4          # >= 2 steps per TensorCore on v7x; pipeline depth else
_MIN_BLOCK = 1 << 20    # never split below the HBM-roofline knee


def _round_up(x, m):
    return (x + m - 1) // m * m


def _sublane(dtype):
    item = jnp.dtype(dtype).itemsize
    return max(8, 32 // max(item, 1))     # 8 rows f32, 16 bf16, 32 int8


def _divisors(n):
    return [d for d in range(1, n + 1) if n % d == 0]


def _padded2d(rows, cols, dtype):
    """VMEM bytes of a (rows, cols) tile after (sublane, 128) padding."""
    return (_round_up(rows, _sublane(dtype)) * _round_up(cols, 128)
            * jnp.dtype(dtype).itemsize)


def _tpu_budget():
    """(vmem_limit_bytes, total double-buffered block budget) per generation."""
    try:
        cap = int(pltpu.get_tpu_info().vmem_capacity_bytes)
    except Exception:
        cap = 64 << 20                     # conservative if query unavailable
    if cap >= (96 << 20):                  # v5e / v6e: 128 MiB physical VMEM
        return 64 << 20, 40 << 20          # ~16 MiB input blocks
    return 44 << 20, 20 << 20              # v7x: 64 MiB physical, headroom


def _pick_rows_flat(G, HW, HoWo, dtype, budget):
    """Rows per block for the lane-packed (G, H*W) path."""
    sub = _sublane(dtype)

    def in_bytes(gb):
        return _padded2d(gb, HW, dtype)

    def foot(gb):
        return 2 * (in_bytes(gb) + _padded2d(gb, HoWo, dtype))

    divs = [d for d in _divisors(G)
            if (d % sub == 0 or d == G) and foot(d) <= budget]
    if not divs:
        divs = [G]                         # full-extent block is always legal
    gb = max(divs)
    if G // gb < _MIN_STEPS:
        for d in sorted(divs, reverse=True):
            if d != G and G // d >= _MIN_STEPS and in_bytes(d) >= _MIN_BLOCK:
                gb = d
                break
    return gb


def _pick_blocks_plane(G, H, W, dtype, budget):
    """(gb, ht) for the (G, H, W) path; padded-VMEM aware, pack aligned."""
    sub = _sublane(dtype)

    def in_bytes(gb, ht):
        return gb * _padded2d(ht, W, dtype)

    def foot(gb, ht):
        return 2 * (in_bytes(gb, ht) + gb * _padded2d(ht // 2, W // 2, dtype))

    if foot(1, H) <= budget:
        divs = [d for d in _divisors(G) if foot(d, H) <= budget]
        gb = max(divs)
        if G // gb < _MIN_STEPS:
            for d in sorted(divs, reverse=True):
                if G // d >= _MIN_STEPS and in_bytes(d, H) >= _MIN_BLOCK:
                    gb = d
                    break
        return gb, H

    # A single (H, W) plane exceeds the budget: tile H.  Multiples of
    # 2*sublane keep both the input block (ht) and output block (ht // 2)
    # pack-aligned (16 rows f32 / 32 rows bf16) -> no relayout copies.
    step = 2 * sub
    aligned = [h for h in _divisors(H) if h % step == 0]
    if aligned:
        fits = [h for h in aligned if foot(1, h) <= budget]
        return 1, (max(fits) if fits else min(aligned))
    even = [h for h in _divisors(H) if h % 2 == 0]
    fits = [h for h in even if foot(1, h) <= budget]
    return 1, (max(fits) if fits else min(even))


# ---------------------------------------------------------------------------
# Wrapper
# ---------------------------------------------------------------------------

def downsample(x, *, block_budget_bytes=None):
    """Pallas TPU implementation of F.avg_pool2d(x, 2) for NCHW input."""
    N, C, H, W = x.shape
    # F.avg_pool2d(x, 2) floor-crops odd trailing rows/cols; PGGAN always uses
    # even dims, so we require them (documented behavioural difference).
    assert H % 2 == 0 and W % 2 == 0, "DownSample expects even H and W"
    Ho, Wo = H // 2, W // 2
    G = N * C
    itemsize = jnp.dtype(x.dtype).itemsize

    vmem_limit, auto_budget = _tpu_budget()
    budget = auto_budget if block_budget_bytes is None else block_budget_bytes

    # Compute dtype for the pooling matrix / MXU: bf16 stays bf16 (0.25 exact),
    # everything else uses f32.  Accumulation is always f32.
    cdtype = jnp.bfloat16 if x.dtype == jnp.dtype(jnp.bfloat16) else jnp.float32
    cd_item = jnp.dtype(cdtype).itemsize

    HW, HoWo = H * W, Ho * Wo
    mat_flat_bytes = _padded2d(HW, HoWo, cdtype)
    use_flat = (W < 128) and (HW <= 2048) and (mat_flat_bytes <= (2 << 20))

    if use_flat:
        # ---------------- small-plane, lane-packed path ------------------
        x2 = x.reshape(G, HW)                          # free, row-major
        col = jnp.arange(HoWo)
        oi, oj = col // Wo, col % Wo
        p = jnp.zeros((HW, HoWo), cdtype)
        for di in (0, 1):
            for dj in (0, 1):
                p = p.at[(2 * oi + di) * W + (2 * oj + dj), col].set(0.25)

        gb = _pick_rows_flat(G, HW, HoWo, x.dtype,
                             max(budget - 2 * mat_flat_bytes, 4 << 20))
        grid = (G // gb,)

        cost = pl.CostEstimate(
            flops=2 * G * HW * HoWo,
            bytes_accessed=G * (HW + HoWo) * itemsize + HW * HoWo * cd_item,
            transcendentals=0,
        )
        out2 = pl.pallas_call(
            _avg_pool_flat_kernel,
            out_shape=jax.ShapeDtypeStruct((G, HoWo), x.dtype),
            grid=grid,
            in_specs=[
                pl.BlockSpec((HW, HoWo), lambda g: (0, 0)),   # resident matrix
                pl.BlockSpec((gb, HW), lambda g: (g, 0)),
            ],
            out_specs=pl.BlockSpec((gb, HoWo), lambda g: (g, 0)),
            compiler_params=pltpu.CompilerParams(
                dimension_semantics=("parallel",),
                vmem_limit_bytes=vmem_limit,
            ),
            cost_estimate=cost,
        )(p, x2)
        return out2.reshape(N, C, Ho, Wo)

    # ---------------- large-plane path --------------------------------------
    x2 = x.reshape(G, H, W)

    # W-pooling matrix (W, Wo): two 0.25 entries per column (exact in bf16).
    j = jnp.arange(Wo)
    b = (jnp.zeros((W, Wo), cdtype)
         .at[2 * j, j].set(0.25)
         .at[2 * j + 1, j].set(0.25))
    mat_bytes = _padded2d(W, Wo, cdtype)
    # TODO(synk): on v5e with f32 and W > 256, a block-diagonal (256, 128)
    # matmul reused across W-chunks would cut MXU MACs by Wo/128; the dense
    # matmul is kept for simplicity (memory-bound on v6e/v7x).

    gb, ht = _pick_blocks_plane(G, H, W, x.dtype,
                                max(budget - 2 * mat_bytes, 4 << 20))
    grid = (G // gb, H // ht)

    cost = pl.CostEstimate(
        flops=G * Ho * W * (1 + 2 * Wo),
        bytes_accessed=(G * H * W * itemsize + G * Ho * Wo * itemsize
                        + W * Wo * cd_item),
        transcendentals=0,
    )
    out2 = pl.pallas_call(
        _avg_pool_plane_kernel,
        out_shape=jax.ShapeDtypeStruct((G, Ho, Wo), x.dtype),
        grid=grid,
        in_specs=[
            pl.BlockSpec((W, Wo), lambda g, h: (0, 0)),        # resident, tiny
            pl.BlockSpec((gb, ht, W), lambda g, h: (g, h, 0)),
        ],
        out_specs=pl.BlockSpec((gb, ht // 2, Wo), lambda g, h: (g, h, 0)),
        compiler_params=pltpu.CompilerParams(
            dimension_semantics=("parallel", "parallel"),
            vmem_limit_bytes=vmem_limit,
        ),
        cost_estimate=cost,
    )(b, x2)
    return out2.reshape(N, C, Ho, Wo)


if __name__ == "__main__":
    key = jax.random.PRNGKey(0)

    # Small-plane (lane-packed) path — matches PGGAN's low-res layers.
    x = jax.random.normal(key, (2, 4, 16, 16), dtype=jnp.float32)
    out = jax.block_until_ready(jax.jit(downsample)(x))
    N, C, H, W = x.shape
    ref = x.reshape(N, C, H // 2, 2, W // 2, 2).mean(axis=(3, 5))
    assert out.shape == (2, 4, 8, 8), out.shape
    assert jnp.allclose(out, ref, atol=1e-5, rtol=1e-5), \
        float(jnp.max(jnp.abs(out - ref)))

    # Large-plane path (W >= 128): strided H add + (W, Wo) matmul.
    x2 = jax.random.normal(jax.random.PRNGKey(1), (1, 2, 128, 128),
                           dtype=jnp.float32)
    out2 = jax.block_until_ready(jax.jit(downsample)(x2))
    ref2 = x2.reshape(1, 2, 64, 2, 64, 2).mean(axis=(3, 5))
    assert out2.shape == (1, 2, 64, 64), out2.shape
    assert jnp.allclose(out2, ref2, atol=1e-5, rtol=1e-5), \
        float(jnp.max(jnp.abs(out2 - ref2)))

    print("KERNEL_OK")
</pallas_src>

<mosaic_0001>
module attributes {stable_mosaic.version = 11 : i64} {
  func.func @_avg_pool_flat_kernel(%arg0: i32, %arg1: memref<256x64xf32, #tpu.memory_space<vmem>>, %arg2: memref<8x256xf32, #tpu.memory_space<vmem>>, %arg3: memref<8x64xf32, #tpu.memory_space<vmem>>) attributes {dimension_semantics = [#tpu.dimension_semantics<parallel>], iteration_bounds = array<i64: 1>, scalar_prefetch = 0 : i64, scratch_operands = 0 : i64, tpu.core_type = #tpu.core_type<tc>, window_params = [{pipeline_mode = #tpu.pipeline_mode<synchronous>, transform_indices = @transform_0, window_bounds = array<i64: 256, 64>}, {transform_indices = @transform_1, window_bounds = array<i64: 8, 256>}, {transform_indices = @transform_2, window_bounds = array<i64: 8, 64>}]} {
    %c0 = arith.constant 0 : index
    %c0_0 = arith.constant 0 : index
    %0 = vector.load %arg2[%c0, %c0_0] : memref<8x256xf32, #tpu.memory_space<vmem>>, vector<8x256xf32>
    %c0_1 = arith.constant 0 : index
    %c0_2 = arith.constant 0 : index
    %1 = vector.load %arg1[%c0_1, %c0_2] : memref<256x64xf32, #tpu.memory_space<vmem>>, vector<256x64xf32>
    %cst = arith.constant dense<0.000000e+00> : vector<8x64xf32>
    %2 = tpu.matmul %0, %1, %cst {dimension_numbers = #tpu.dot_dimension_numbers<[1], [0], [0], [1], [0, 0, 1, 1], [], []>} : vector<8x256xf32>, vector<256x64xf32>, vector<8x64xf32> -> vector<8x64xf32>
    %c0_3 = arith.constant 0 : index
    %c0_4 = arith.constant 0 : index
    %3 = vector.load %arg3[%c0_3, %c0_4] : memref<8x64xf32, #tpu.memory_space<vmem>>, vector<8x64xf32>
    tpu.vector_store %arg3[%c0_3, %c0_4], %2 {strides = array<i32>} : memref<8x64xf32, #tpu.memory_space<vmem>>, vector<8x64xf32>,
    return
  }
  func.func @transform_0(%arg0: i32) -> (i32, i32) {
    %c0_i32 = arith.constant 0 : i32
    %c0_i32_0 = arith.constant 0 : i32
    %c0_i32_1 = arith.constant 0 : i32
    return %c0_i32, %c0_i32_0 : i32, i32
  }
  func.func @transform_1(%arg0: i32) -> (i32, i32) {
    %c0_i32 = arith.constant 0 : i32
    %c0_i32_0 = arith.constant 0 : i32
    return %arg0, %c0_i32 : i32, i32
  }
  func.func @transform_2(%arg0: i32) -> (i32, i32) {
    %c0_i32 = arith.constant 0 : i32
    %c0_i32_0 = arith.constant 0 : i32
    return %arg0, %c0_i32 : i32, i32
  }
}

</mosaic_0001>

<llo_original>
// kernel: downsample.1
$region0: #{downsample.1}
  #allocation0 [shape = 'u32[]', space=smem, size = 0x4, offset = 0x4, fixed_abs, tag = 'smem constant byte address 0x4 - core index']
  #allocation1 [shape = 'u32[72,128]{1,0:T(1,128)}', space=vmem, size = 0x9000, scoped, tag = 'internal scratch']
  %s0 = inlined_call_operand.vmem [shape: f32[256,64], index: 0, kind: input, shape index: {}]
  %s1 = inlined_call_operand.vmem [shape: f32[8,256], index: 1, kind: input, shape index: {}]
  %s2 = inlined_call_operand.vmem [shape: f32[8,64], index: 2, kind: output, shape index: {}]
  %s3 = sld [smem:[#allocation0]]
  $region18: #{downsample.1} parent=0
    _
  %s5 = ssub.s32 1, %s3
  %s6 = scalar_select 0, %s5, %s3
  // Predicated region
  $region2: #{downsample.1} parent=0 // pred_check
    _
  $region3: #{downsample.1} parent=0 // pred_check_branch
    %8 = sbr.rel (0) target = $region5
  $region4: #{downsample.1} parent=0 // pred_region
    _
  $region5: #{downsample.1} parent=0 // pred_fallthru
    _
  // Predicated region
  $region6: #{downsample.1} parent=0 // pred_check
    _
  $region7: #{downsample.1} parent=0 // pred_check_branch
    %10 = sbr.rel (0) target = $region9
  $region8: #{downsample.1} parent=0 // pred_region
    _
  $region9: #{downsample.1} parent=0 // pred_fallthru
    _
  %v11 = vld [vmem:[%s1] sm:$0xff]
  %v12 = vld [vmem:[%s1 + $0x8] sm:$0xff]
  %v13 = vld [vmem:[%s0] sm:$0xff]
  %v14 = vld [vmem:[%s0 + $0x8] sm:$0xff]
  %v15 = vld [vmem:[%s0 + $0x10] sm:$0xff]
  %v16 = vld [vmem:[%s0 + $0x18] sm:$0xff]
  %v17 = vld [vmem:[%s0 + $0x20] sm:$0xff]
  %v18 = vld [vmem:[%s0 + $0x28] sm:$0xff]
  %v19 = vld [vmem:[%s0 + $0x30] sm:$0xff]
  %v20 = vld [vmem:[%s0 + $0x38] sm:$0xff]
  %v21 = vld [vmem:[%s0 + $0x40] sm:$0xff]
  %v22 = vld [vmem:[%s0 + $0x48] sm:$0xff]
  %v23 = vld [vmem:[%s0 + $0x50] sm:$0xff]
  %v24 = vld [vmem:[%s0 + $0x58] sm:$0xff]
  %v25 = vld [vmem:[%s0 + $0x60] sm:$0xff]
  %v26 = vld [vmem:[%s0 + $0x68] sm:$0xff]
  %v27 = vld [vmem:[%s0 + $0x70] sm:$0xff]
  %v28 = vld [vmem:[%s0 + $0x78] sm:$0xff]
  %v29 = vld [vmem:[%s0 + $0x80] sm:$0xff]
  %v30 = vld [vmem:[%s0 + $0x88] sm:$0xff]
  %v31 = vld [vmem:[%s0 + $0x90] sm:$0xff]
  %v32 = vld [vmem:[%s0 + $0x98] sm:$0xff]
  %v33 = vld [vmem:[%s0 + $0xa0] sm:$0xff]
  %v34 = vld [vmem:[%s0 + $0xa8] sm:$0xff]
  %v35 = vld [vmem:[%s0 + $0xb0] sm:$0xff]
  %v36 = vld [vmem:[%s0 + $0xb8] sm:$0xff]
  %v37 = vld [vmem:[%s0 + $0xc0] sm:$0xff]
  %v38 = vld [vmem:[%s0 + $0xc8] sm:$0xff]
  %v39 = vld [vmem:[%s0 + $0xd0] sm:$0xff]
  %v40 = vld [vmem:[%s0 + $0xd8] sm:$0xff]
  %v41 = vld [vmem:[%s0 + $0xe0] sm:$0xff]
  %v42 = vld [vmem:[%s0 + $0xe8] sm:$0xff]
  %v43 = vld [vmem:[%s0 + $0xf0] sm:$0xff]
  %v44 = vld [vmem:[%s0 + $0xf8] sm:$0xff]
  %45 = vmatpush.msra.mxu0 %v28
  %46 = vmatpush.msra.mxu0 %v27
  %47 = vmatpush.msra.mxu0 %v26
  %48 = vmatpush.msra.mxu0 %v25
  %49 = vmatpush.msra.mxu0 %v24
  %50 = vmatpush.msra.mxu0 %v23
  %51 = vmatpush.msra.mxu0 %v22
  %52 = vmatpush.msra.mxu0 %v21
  %53 = vmatpush.msra.mxu0 %v20
  %54 = vmatpush.msra.mxu0 %v19
  %55 = vmatpush.msra.mxu0 %v18
  %56 = vmatpush.msra.mxu0 %v17
  %57 = vmatpush.msra.mxu0 %v16
  %58 = vmatpush.msra.mxu0 %v15
  %59 = vmatpush.msra.mxu0 %v14
  %60 = vmatpush.msra.mxu0 %v13
  %61 = vmatmul.f32.gmra.mxu0 %v11
  %v62 = vpop.f32.mrf.mxu0
  %v63 = vadd.f32 0.0, %v62
  %64 = vdwg.mxu0
  %65 = vmatpush.msra.mxu0 %v44
  %66 = vmatpush.msra.mxu0 %v43
  %67 = vmatpush.msra.mxu0 %v42
  %68 = vmatpush.msra.mxu0 %v41
  %69 = vmatpush.msra.mxu0 %v40
  %70 = vmatpush.msra.mxu0 %v39
  %71 = vmatpush.msra.mxu0 %v38
  %72 = vmatpush.msra.mxu0 %v37
  %73 = vmatpush.msra.mxu0 %v36
  %74 = vmatpush.msra.mxu0 %v35
  %75 = vmatpush.msra.mxu0 %v34
  %76 = vmatpush.msra.mxu0 %v33
  %77 = vmatpush.msra.mxu0 %v32
  %78 = vmatpush.msra.mxu0 %v31
  %79 = vmatpush.msra.mxu0 %v30
  %80 = vmatpush.msra.mxu0 %v29
  %81 = vmatmul.f32.gmra.mxu0 %v12
  %v82 = vpop.f32.mrf.mxu0
  %v83 = vadd.f32 %v63, %v82
  %84 = vdwg.mxu0
  %vm85 = vcmask 523264
  %86 = vst.msk [vmem:[%s2] sm:$0xff] %vm85, %v83
  // Predicated region
  $region10: #{downsample.1} parent=0 // pred_check
    _
  $region11: #{downsample.1} parent=0 // pred_check_branch
    %88 = sbr.rel (0) target = $region13
  $region12: #{downsample.1} parent=0 // pred_region
    _
  $region13: #{downsample.1} parent=0 // pred_fallthru
    _
  // Predicated region
  $region14: #{downsample.1} parent=0 // pred_check
    _
  $region15: #{downsample.1} parent=0 // pred_check_branch
    %90 = sbr.rel (0) target = $region17
  $region16: #{downsample.1} parent=0 // pred_region
    _
  $region17: #{downsample.1} parent=0 // pred_fallthru
    _

</llo_original>
